<compile_context>
chip_gen: v5e
topology: v5e:2x2
jax: 0.10.0
libtpu: 0.0.40
codegen_flags: <defaults>
</compile_context>

<pallas_src>
import jax
import jax.numpy as jnp
from jax.experimental import pallas as pl
from jax.experimental.pallas import tpu as pltpu


def _round_up(n, m):
    return ((n + m - 1) // m) * m


def daisychain_kernel(x_ref, w1_ref, b1_ref, w2_ref, b2_ref, o_ref):
    # Linear(20 -> 256) on zero-padded K=128 contraction (exact).
    h = jnp.dot(x_ref[...], w1_ref[...], preferred_element_type=jnp.float32)
    # Bias + ReLU (f32 elementwise — safe on all generations incl. v5e).
    h = jnp.maximum(h + b1_ref[...], 0.0)
    # Linear(256 -> 20) into a lane-dense 128-wide padded output.
    o = jnp.dot(h, w2_ref[...], preferred_element_type=jnp.float32)
    o_ref[...] = (o + b2_ref[...]).astype(o_ref.dtype)


def daisychain_forward(x, w1, b1, w2, b2, *, block_m=256):
    """x: [B, d_in]; w1: [d_in, d_hid]; b1: [1, d_hid]; w2: [d_hid, d_out]; b2: [1, d_out]."""
    B, d_in = x.shape
    d_hid = w1.shape[1]
    d_out = w2.shape[1]

    K_PAD = _round_up(d_in, 128)     # lane-dense contraction dim
    N_PAD = _round_up(d_out, 128)    # lane-dense output dim

    # Batch tile: multiple of 8, capped at block_m; pad batch to a tile multiple.
    tm = min(block_m, _round_up(B, 8))
    tm = _round_up(tm, 8)
    B_pad = _round_up(B, tm)

    # Zero-padding is exact: padded K columns contribute 0 to the first dot,
    # padded output columns get 0 weight + 0 bias and are sliced away below.
    x_p = jnp.zeros((B_pad, K_PAD), x.dtype).at[:B, :d_in].set(x)
    w1_p = jnp.zeros((K_PAD, d_hid), w1.dtype).at[:d_in, :].set(w1)
    w2_p = jnp.zeros((d_hid, N_PAD), w2.dtype).at[:, :d_out].set(w2)
    b2_p = jnp.zeros((1, N_PAD), b2.dtype).at[:, :d_out].set(b2)

    grid = (B_pad // tm,)

    flops = 2 * B_pad * (K_PAD * d_hid + d_hid * N_PAD)
    bytes_accessed = 4 * (x_p.size + w1_p.size + b1.size + w2_p.size + b2_p.size
                          + B_pad * N_PAD)

    out_p = pl.pallas_call(
        daisychain_kernel,
        out_shape=jax.ShapeDtypeStruct((B_pad, N_PAD), jnp.float32),
        grid_spec=pltpu.PrefetchScalarGridSpec(
            num_scalar_prefetch=0,
            grid=grid,
            in_specs=[
                pl.BlockSpec((tm, K_PAD), lambda i: (i, 0)),       # x tile (pipelined)
                pl.BlockSpec((K_PAD, d_hid), lambda i: (0, 0)),    # W1 (resident)
                pl.BlockSpec((1, d_hid), lambda i: (0, 0)),        # b1 (resident)
                pl.BlockSpec((d_hid, N_PAD), lambda i: (0, 0)),    # W2 (resident)
                pl.BlockSpec((1, N_PAD), lambda i: (0, 0)),        # b2 (resident)
            ],
            out_specs=pl.BlockSpec((tm, N_PAD), lambda i: (i, 0)),
        ),
        compiler_params=pltpu.CompilerParams(dimension_semantics=("parallel",)),
        cost_estimate=pl.CostEstimate(
            flops=flops, transcendentals=0, bytes_accessed=bytes_accessed),
    )(x_p, w1_p, b1, w2_p, b2_p)

    return out_p[:B, :d_out]


def init_params(key, d_in=20, d_hidden=256, d_out=20):
    # Deterministic init mimicking nn.Linear's U(-1/sqrt(fan_in), 1/sqrt(fan_in)).
    k1, k2, k3, k4 = jax.random.split(key, 4)
    lim1 = 1.0 / jnp.sqrt(jnp.float32(d_in))
    lim2 = 1.0 / jnp.sqrt(jnp.float32(d_hidden))
    w1 = jax.random.uniform(k1, (d_in, d_hidden), jnp.float32, -lim1, lim1)
    b1 = jax.random.uniform(k2, (1, d_hidden), jnp.float32, -lim1, lim1)
    w2 = jax.random.uniform(k3, (d_hidden, d_out), jnp.float32, -lim2, lim2)
    b2 = jax.random.uniform(k4, (1, d_out), jnp.float32, -lim2, lim2)
    return w1, b1, w2, b2


def reference_forward(x, w1, b1, w2, b2):
    h = jnp.maximum(x @ w1 + b1, 0.0)
    return h @ w2 + b2


if __name__ == "__main__":
    key = jax.random.PRNGKey(0)
    kx, kp = jax.random.split(key)

    B, D_IN, D_HID, D_OUT = 64, 20, 256, 20
    x = jax.random.normal(kx, (B, D_IN), dtype=jnp.float32)
    w1, b1, w2, b2 = init_params(kp, D_IN, D_HID, D_OUT)

    # block_m=32 -> 2 grid steps at B=64, exercising the pipelined batch grid.
    out = daisychain_forward(x, w1, b1, w2, b2, block_m=32)
    out = jax.block_until_ready(out)

    ref = reference_forward(x, w1, b1, w2, b2)
    assert out.shape == (B, D_OUT)
    assert jnp.allclose(out, ref, atol=1e-5, rtol=1e-5)

    print("KERNEL_OK")
</pallas_src>

<mosaic_0001>
module attributes {stable_mosaic.version = 11 : i64} {
  func.func @daisychain_kernel(%arg0: i32, %arg1: memref<32x128xf32, #tpu.memory_space<vmem>>, %arg2: memref<128x256xf32, #tpu.memory_space<vmem>>, %arg3: memref<1x256xf32, #tpu.memory_space<vmem>>, %arg4: memref<256x128xf32, #tpu.memory_space<vmem>>, %arg5: memref<1x128xf32, #tpu.memory_space<vmem>>, %arg6: memref<32x128xf32, #tpu.memory_space<vmem>>) attributes {dimension_semantics = [#tpu.dimension_semantics<parallel>], iteration_bounds = array<i64: 2>, scalar_prefetch = 0 : i64, scratch_operands = 0 : i64, tpu.core_type = #tpu.core_type<tc>, window_params = [{transform_indices = @transform_0, window_bounds = array<i64: 32, 128>}, {pipeline_mode = #tpu.pipeline_mode<synchronous>, transform_indices = @transform_1, window_bounds = array<i64: 128, 256>}, {pipeline_mode = #tpu.pipeline_mode<synchronous>, transform_indices = @transform_2, window_bounds = array<i64: 1, 256>}, {pipeline_mode = #tpu.pipeline_mode<synchronous>, transform_indices = @transform_3, window_bounds = array<i64: 256, 128>}, {pipeline_mode = #tpu.pipeline_mode<synchronous>, transform_indices = @transform_4, window_bounds = array<i64: 1, 128>}, {transform_indices = @transform_5, window_bounds = array<i64: 32, 128>}]} {
    %c0 = arith.constant 0 : index
    %c0_0 = arith.constant 0 : index
    %0 = vector.load %arg1[%c0, %c0_0] : memref<32x128xf32, #tpu.memory_space<vmem>>, vector<32x128xf32>
    %c0_1 = arith.constant 0 : index
    %c0_2 = arith.constant 0 : index
    %1 = vector.load %arg2[%c0_1, %c0_2] : memref<128x256xf32, #tpu.memory_space<vmem>>, vector<128x256xf32>
    %cst = arith.constant dense<0.000000e+00> : vector<32x256xf32>
    %2 = tpu.matmul %0, %1, %cst {dimension_numbers = #tpu.dot_dimension_numbers<[1], [0], [0], [1], [0, 0, 1, 1], [], []>} : vector<32x128xf32>, vector<128x256xf32>, vector<32x256xf32> -> vector<32x256xf32>
    %c0_3 = arith.constant 0 : index
    %c0_4 = arith.constant 0 : index
    %3 = vector.load %arg3[%c0_3, %c0_4] : memref<1x256xf32, #tpu.memory_space<vmem>>, vector<1x256xf32>
    %4 = vector.broadcast %3 : vector<1x256xf32> to vector<32x256xf32>
    %5 = arith.addf %2, %4 : vector<32x256xf32>
    %cst_5 = arith.constant 0.000000e+00 : f32
    %6 = vector.broadcast %cst_5 : f32 to vector<32x256xf32>
    %7 = arith.maximumf %5, %6 : vector<32x256xf32>
    %c0_6 = arith.constant 0 : index
    %c0_7 = arith.constant 0 : index
    %8 = vector.load %arg4[%c0_6, %c0_7] : memref<256x128xf32, #tpu.memory_space<vmem>>, vector<256x128xf32>
    %cst_8 = arith.constant dense<0.000000e+00> : vector<32x128xf32>
    %9 = tpu.matmul %7, %8, %cst_8 {dimension_numbers = #tpu.dot_dimension_numbers<[1], [0], [0], [1], [0, 0, 1, 1], [], []>} : vector<32x256xf32>, vector<256x128xf32>, vector<32x128xf32> -> vector<32x128xf32>
    %c0_9 = arith.constant 0 : index
    %c0_10 = arith.constant 0 : index
    %10 = vector.load %arg5[%c0_9, %c0_10] : memref<1x128xf32, #tpu.memory_space<vmem>>, vector<1x128xf32>
    %11 = vector.broadcast %10 : vector<1x128xf32> to vector<32x128xf32>
    %12 = arith.addf %9, %11 : vector<32x128xf32>
    %c0_11 = arith.constant 0 : index
    %c0_12 = arith.constant 0 : index
    %13 = vector.load %arg6[%c0_11, %c0_12] : memref<32x128xf32, #tpu.memory_space<vmem>>, vector<32x128xf32>
    tpu.vector_store %arg6[%c0_11, %c0_12], %12 {strides = array<i32>} : memref<32x128xf32, #tpu.memory_space<vmem>>, vector<32x128xf32>,
    return
  }
  func.func @transform_0(%arg0: i32) -> (i32, i32) {
    %c0_i32 = arith.constant 0 : i32
    %c0_i32_0 = arith.constant 0 : i32
    return %arg0, %c0_i32 : i32, i32
  }
  func.func @transform_1(%arg0: i32) -> (i32, i32) {
    %c0_i32 = arith.constant 0 : i32
    %c0_i32_0 = arith.constant 0 : i32
    %c0_i32_1 = arith.constant 0 : i32
    return %c0_i32, %c0_i32_0 : i32, i32
  }
  func.func @transform_2(%arg0: i32) -> (i32, i32) {
    %c0_i32 = arith.constant 0 : i32
    %c0_i32_0 = arith.constant 0 : i32
    %c0_i32_1 = arith.constant 0 : i32
    return %c0_i32, %c0_i32_0 : i32, i32
  }
  func.func @transform_3(%arg0: i32) -> (i32, i32) {
    %c0_i32 = arith.constant 0 : i32
    %c0_i32_0 = arith.constant 0 : i32
    %c0_i32_1 = arith.constant 0 : i32
    return %c0_i32, %c0_i32_0 : i32, i32
  }
  func.func @transform_4(%arg0: i32) -> (i32, i32) {
    %c0_i32 = arith.constant 0 : i32
    %c0_i32_0 = arith.constant 0 : i32
    %c0_i32_1 = arith.constant 0 : i32
    return %c0_i32, %c0_i32_0 : i32, i32
  }
  func.func @transform_5(%arg0: i32) -> (i32, i32) {
    %c0_i32 = arith.constant 0 : i32
    %c0_i32_0 = arith.constant 0 : i32
    return %arg0, %c0_i32 : i32, i32
  }
}

</mosaic_0001>

<llo_original>
// kernel: tpu_custom_call.1
$region0: #{tpu_custom_call.1}
  #allocation0 [shape = 'u32[]', space=smem, size = 0x4, offset = 0x4, fixed_abs, tag = 'smem constant byte address 0x4 - core index']
  #allocation1 [shape = 'u32[72,128]{1,0:T(1,128)}', space=vmem, size = 0x9000, scoped, tag = 'internal scratch']
  %s0 = inlined_call_operand.hbm [shape: f32[64,128], index: 0, kind: input, shape index: {}]
  %s1 = inlined_call_operand.hbm [shape: f32[128,256], index: 1, kind: input, shape index: {}]
  %s2 = inlined_call_operand.hbm [shape: f32[1,256], index: 2, kind: input, shape index: {}]
  %s3 = inlined_call_operand.hbm [shape: f32[256,128], index: 3, kind: input, shape index: {}]
  %s4 = inlined_call_operand.vmem [shape: f32[1,128], index: 4, kind: input, shape index: {}]
  %s5 = inlined_call_operand.hbm [shape: f32[64,128], index: 5, kind: output, shape index: {}]
  %s6 = sld [smem:[#allocation0]]
  $region69: #{tpu_custom_call.1} parent=0
    _
  %s8 = ssub.s32 1, %s6
  %s9 = scalar_select 0, %s8, %s6
  $region1: #{tpu_custom_call.1} parent=0
    #allocation2 [shape = 'u8[32768]{0}', space=vmem, size = 0x8000, scoped, tag = 'input window, operand 0']
    #allocation3 [shape = 's32[2]{0}', space=sflag, size = 0x8, scoped, tag = 'scoped memory for tpu_custom_call.1']
    #allocation4 [shape = 's32[2]{0}', space=sflag, size = 0x8, scoped, tag = 'scoped memory for tpu_custom_call.1']
    #allocation5 [shape = 'u8[131072]{0}', space=vmem, size = 0x20000, scoped, tag = 'input window, operand 1, single buffered']
    #allocation6 [shape = 's32[1]{0}', space=sflag, size = 0x4, scoped, tag = 'scoped memory for tpu_custom_call.1']
    #allocation7 [shape = 'u8[1024]{0}', space=vmem, size = 0x400, scoped, tag = 'input window, operand 2, single buffered']
    #allocation8 [shape = 'u8[131072]{0}', space=vmem, size = 0x20000, scoped, tag = 'input window, operand 3, single buffered']
    #allocation9 [shape = 's32[1]{0}', space=sflag, size = 0x4, scoped, tag = 'scoped memory for tpu_custom_call.1']
    #allocation10 [shape = 'u8[32768]{0}', space=vmem, size = 0x8000, scoped, tag = 'output window, operand 0']
    %10 = vsyncpa [#allocation3], 0
    %s11 = scalar_lea.sflag [#allocation3], 1
    %12 = vsyncpa %s11, 0
    %13 = vsyncpa [#allocation6], 0
    %14 = vsyncpa [#allocation9], 0
    %15 = vsyncpa [#allocation4], 0
    %s16 = scalar_lea.sflag [#allocation4], 1
    %17 = vsyncpa %s16, 0
    loop: start=0, step=1, limit=4
    $region2: #{tpu_custom_call.1} parent=1 // loop_pre_header
      _
    $region3: #{tpu_custom_call.1} parent=1 // loop_header
      %s19 = sphi 0, %s23
      %p20 = scmp.ge.s32.totalorder %s19, 4
      %s29 = sphi 0, %s31
      %s32 = sphi 0, %s29
      %s33 = sphi 0, %s32
      %s49 = sphi 0, %s33
      %s53 = sphi 0, %s53
      %s55 = sphi 0, %s53
      %s56 = sphi 0, %s55
      %s70 = sphi 0, %s56
      %s74 = sphi 0, %s74
      %s76 = sphi 0, %s74
      %s77 = sphi 0, %s76
      %s91 = sphi 0, %s77
      %s95 = sphi 0, %s95
      %s97 = sphi 0, %s95
      %s98 = sphi 0, %s97
      %s112 = sphi 0, %s98
      %s116 = sphi 0, %s116
      %s118 = sphi 0, %s116
      %s119 = sphi 0, %s118
      %s133 = sphi 0, %s119
      %s139 = sphi 0, %s141
      %s142 = sphi 0, %s139
      %s143 = sphi 0, %s142
      %s159 = sphi 0, %s143
    $region4: #{tpu_custom_call.1} parent=1 // loop_header_branch
      %22 = sbr.rel (%p20) target = $region8
    $region5: #{tpu_custom_call.1} parent=1 // loop_body
      %s24 = ssub.s32 %s19, 1
      %s25 = ssub.s32 %s19, 2
      %s26 = sadd.s32 %s19, 1
      %s27 = ssub.s32 %s19, %s26
      %p28 = scmp.eq.s32.totalorder %s27, 0
      %s30 = sadd.s32 %s29, 1
      %s31 = scalar_select %p28, %s29, %s30
      %p34 = pneg %p28
      %p35 = scmp.eq.s32.totalorder %s19, 1
      %p36 = por %p34, %p35
      %p37 = scmp.ne.s32.totalorder %s29, %s32
      %p38 = scmp.eq.s32.totalorder %s19, 0
      %p39 = por %p37, %p38
      %p40 = scmp.ne.s32.totalorder %s29, %s32
      %p41 = scmp.eq.s32.totalorder %s24, 1
      %p42 = por %p40, %p41
      %p43 = scmp.ne.s32.totalorder %s32, %s33
      %p44 = scmp.eq.s32.totalorder %s24, 0
      %p45 = por %p43, %p44
      %p46 = scmp.ne.s32.totalorder %s32, %s33
      %p47 = scmp.eq.s32.totalorder %s25, 1
      %p48 = por %p46, %p47
      %p50 = scmp.ne.s32.totalorder %s33, %s49
      %p51 = scmp.eq.s32.totalorder %s25, 0
      %p52 = por %p50, %p51
      %s54 = sadd.s32 %s53, 1
      %p57 = scmp.eq.s32.totalorder %s19, 1
      %p58 = scmp.ne.s32.totalorder %s53, %s55
      %p59 = scmp.eq.s32.totalorder %s19, 0
      %p60 = por %p58, %p59
      %p61 = scmp.ne.s32.totalorder %s53, %s55
      %p62 = scmp.eq.s32.totalorder %s24, 1
      %p63 = por %p61, %p62
      %p64 = scmp.ne.s32.totalorder %s55, %s56
      %p65 = scmp.eq.s32.totalorder %s24, 0
      %p66 = por %p64, %p65
      %p67 = scmp.ne.s32.totalorder %s55, %s56
      %p68 = scmp.eq.s32.totalorder %s25, 1
      %p69 = por %p67, %p68
      %p71 = scmp.ne.s32.totalorder %s56, %s70
      %p72 = scmp.eq.s32.totalorder %s25, 0
      %p73 = por %p71, %p72
      %s75 = sadd.s32 %s74, 1
      %p78 = scmp.eq.s32.totalorder %s19, 1
      %p79 = scmp.ne.s32.totalorder %s74, %s76
      %p80 = scmp.eq.s32.totalorder %s19, 0
      %p81 = por %p79, %p80
      %p82 = scmp.ne.s32.totalorder %s74, %s76
      %p83 = scmp.eq.s32.totalorder %s24, 1
      %p84 = por %p82, %p83
      %p85 = scmp.ne.s32.totalorder %s76, %s77
      %p86 = scmp.eq.s32.totalorder %s24, 0
      %p87 = por %p85, %p86
      %p88 = scmp.ne.s32.totalorder %s76, %s77
      %p89 = scmp.eq.s32.totalorder %s25, 1
      %p90 = por %p88, %p89
      %p92 = scmp.ne.s32.totalorder %s77, %s91
      %p93 = scmp.eq.s32.totalorder %s25, 0
      %p94 = por %p92, %p93
      %s96 = sadd.s32 %s95, 1
      %p99 = scmp.eq.s32.totalorder %s19, 1
      %p100 = scmp.ne.s32.totalorder %s95, %s97
      %p101 = scmp.eq.s32.totalorder %s19, 0
      %p102 = por %p100, %p101
      %p103 = scmp.ne.s32.totalorder %s95, %s97
      %p104 = scmp.eq.s32.totalorder %s24, 1
      %p105 = por %p103, %p104
      %p106 = scmp.ne.s32.totalorder %s97, %s98
      %p107 = scmp.eq.s32.totalorder %s24, 0
      %p108 = por %p106, %p107
      %p109 = scmp.ne.s32.totalorder %s97, %s98
      %p110 = scmp.eq.s32.totalorder %s25, 1
      %p111 = por %p109, %p110
      %p113 = scmp.ne.s32.totalorder %s98, %s112
      %p114 = scmp.eq.s32.totalorder %s25, 0
      %p115 = por %p113, %p114
      %s117 = sadd.s32 %s116, 1
      %p120 = scmp.eq.s32.totalorder %s19, 1
      %p121 = scmp.ne.s32.totalorder %s116, %s118
      %p122 = scmp.eq.s32.totalorder %s19, 0
      %p123 = por %p121, %p122
      %p124 = scmp.ne.s32.totalorder %s116, %s118
      %p125 = scmp.eq.s32.totalorder %s24, 1
      %p126 = por %p124, %p125
      %p127 = scmp.ne.s32.totalorder %s118, %s119
      %p128 = scmp.eq.s32.totalorder %s24, 0
      %p129 = por %p127, %p128
      %p130 = scmp.ne.s32.totalorder %s118, %s119
      %p131 = scmp.eq.s32.totalorder %s25, 1
      %p132 = por %p130, %p131
      %p134 = scmp.ne.s32.totalorder %s119, %s133
      %p135 = scmp.eq.s32.totalorder %s25, 0
      %p136 = por %p134, %p135
      %s137 = ssub.s32 %s19, %s26
      %p138 = scmp.eq.s32.totalorder %s137, 0
      %s140 = sadd.s32 %s139, 1
      %s141 = scalar_select %p138, %s139, %s140
      %p144 = pneg %p138
      %p145 = scmp.eq.s32.totalorder %s19, 1
      %p146 = por %p144, %p145
      %p147 = scmp.ne.s32.totalorder %s139, %s142
      %p148 = scmp.eq.s32.totalorder %s19, 0
      %p149 = por %p147, %p148
      %p150 = scmp.ne.s32.totalorder %s139, %s142
      %p151 = scmp.eq.s32.totalorder %s24, 1
      %p152 = por %p150, %p151
      %p153 = scmp.ne.s32.totalorder %s142, %s143
      %p154 = scmp.eq.s32.totalorder %s24, 0
      %p155 = por %p153, %p154
      %p156 = scmp.ne.s32.totalorder %s142, %s143
      %p157 = scmp.eq.s32.totalorder %s25, 1
      %p158 = por %p156, %p157
      %p160 = scmp.ne.s32.totalorder %s143, %s159
      %p161 = scmp.eq.s32.totalorder %s25, 0
      %p162 = por %p160, %p161
      %p163 = scmp.le.s32.totalorder 1, %s19
      %p164 = scmp.lt.s32.totalorder %s19, 3
      %p165 = pnand %p163, %p164
      %p166 = pneg %p165
      // Predicated region
      $region9: #{tpu_custom_call.1} parent=5 // pred_check
        _
      $region10: #{tpu_custom_call.1} parent=5 // pred_check_branch
        %168 = sbr.rel (%p165) target = $region12
      $region11: #{tpu_custom_call.1} parent=5 // pred_region
        %s169 = ssub.s32 %s19, 1
        // Predicated region
        $region13: #{tpu_custom_call.1} parent=11 // pred_check
          %p170 = pneg %p66
        $region14: #{tpu_custom_call.1} parent=11 // pred_check_branch
          %172 = sbr.rel (%p170) target = $region16
        $region15: #{tpu_custom_call.1} parent=11 // pred_region
          %174 = vsyncadd [#allocation6], 0
          %s175 = sshll.u32 %s1, 4
          %s176 = int_to_ptr.hbm [resolvable:$true] %s175
          %s177 = sshll.u32 [#allocation5], 4
          %s178 = int_to_ptr.vmem [resolvable:$true] %s177
          %183 = dma.hbm_to_vmem [thread:$0]  %s176, 4096, %s178, [#allocation6], 256, 256, 16
        $region16: #{tpu_custom_call.1} parent=11 // pred_fallthru
          _
        // Predicated region
        $region17: #{tpu_custom_call.1} parent=11 // pred_check
          %p184 = pneg %p87
        $region18: #{tpu_custom_call.1} parent=11 // pred_check_branch
          %186 = sbr.rel (%p184) target = $region20
        $region19: #{tpu_custom_call.1} parent=11 // pred_region
          %188 = vsyncadd [#allocation6], 0
          %s190 = sshll.u32 %s2, 4
          %s191 = int_to_ptr.hbm [resolvable:$true] %s190
          %s192 = sshll.u32 [#allocation7], 4
          %s193 = int_to_ptr.vmem [resolvable:$true] %s192
          %195 = dma.hbm_to_vmem [thread:$0]  %s191, 32, %s193, [#allocation6]
        $region20: #{tpu_custom_call.1} parent=11 // pred_fallthru
          _
        // Predicated region
        $region21: #{tpu_custom_call.1} parent=11 // pred_check
          %p196 = pneg %p108
        $region22: #{tpu_custom_call.1} parent=11 // pred_check_branch
          %198 = sbr.rel (%p196) target = $region24
        $region23: #{tpu_custom_call.1} parent=11 // pred_region
          %200 = vsyncadd [#allocation9], 0
          %s201 = sshll.u32 %s3, 4
          %s202 = int_to_ptr.hbm [resolvable:$true] %s201
          %s203 = sshll.u32 [#allocation8], 4
          %s204 = int_to_ptr.vmem [resolvable:$true] %s203
          %209 = dma.hbm_to_vmem [thread:$0]  %s202, 4096, %s204, [#allocation9], 128, 128, 8
        $region24: #{tpu_custom_call.1} parent=11 // pred_fallthru
          _
        // Predicated region
        $region25: #{tpu_custom_call.1} parent=11 // pred_check
          %p210 = pneg %p129
        $region26: #{tpu_custom_call.1} parent=11 // pred_check_branch
          %212 = sbr.rel (%p210) target = $region28
        $region27: #{tpu_custom_call.1} parent=11 // pred_region
          _
        $region28: #{tpu_custom_call.1} parent=11 // pred_fallthru
          _
      $region12: #{tpu_custom_call.1} parent=5 // pred_fallthru
        _
      %p213 = scmp.lt.s32.totalorder %s19, 2
      // Predicated region
      $region29: #{tpu_custom_call.1} parent=5 // pred_check
        %p214 = pneg %p213
      $region30: #{tpu_custom_call.1} parent=5 // pred_check_branch
        %216 = sbr.rel (%p214) target = $region32
      $region31: #{tpu_custom_call.1} parent=5 // pred_region
        // Predicated region
        $region33: #{tpu_custom_call.1} parent=31 // pred_check
          %p217 = pneg %p39
        $region34: #{tpu_custom_call.1} parent=31 // pred_check_branch
          %219 = sbr.rel (%p217) target = $region36
        $region35: #{tpu_custom_call.1} parent=31 // pred_region
          %s220 = sand.u32 %s29, 1
          %s221 = scalar_lea.sflag [#allocation3], %s220
          %s222 = sand.u32 %s29, 1
          %s223 = smul.addr %s222, 32
          %s224 = scalar_lea.vmem [#allocation2], %s223
          %s225 = smul.u32 4, %s19
          %227 = vsyncadd %s221, 0
          %s228 = smul.addr %s225, 8
          %s229 = scalar_lea.hbm %s0, %s228
          %s230 = sshll.u32 %s229, 4
          %s231 = int_to_ptr.hbm [resolvable:$true] %s230
          %s232 = sshll.u32 %s224, 4
          %s233 = int_to_ptr.vmem [resolvable:$true] %s232
          %238 = dma.hbm_to_vmem [thread:$0]  %s231, 512, %s233, %s221, 128, 128, 8
        $region36: #{tpu_custom_call.1} parent=31 // pred_fallthru
          _
      $region32: #{tpu_custom_call.1} parent=5 // pred_fallthru
        _
      %p239 = scmp.le.s32.totalorder 1, %s19
      %p240 = scmp.lt.s32.totalorder %s19, 3
      %p241 = pnand %p239, %p240
      %p242 = pneg %p241
      // Predicated region
      $region37: #{tpu_custom_call.1} parent=5 // pred_check
        _
      $region38: #{tpu_custom_call.1} parent=5 // pred_check_branch
        %244 = sbr.rel (%p241) target = $region40
      $region39: #{tpu_custom_call.1} parent=5 // pred_region
        %s245 = ssub.s32 %s19, 1
        %s246 = sand.u32 %s32, 1
        %s247 = scalar_lea.sflag [#allocation3], %s246
        %s248 = sand.u32 %s32, 1
        %s249 = smul.addr %s248, 32
        %s250 = scalar_lea.vmem [#allocation2], %s249
        // Predicated region
        $region41: #{tpu_custom_call.1} parent=39 // pred_check
          %p251 = pneg %p45
        $region42: #{tpu_custom_call.1} parent=39 // pred_check_branch
          %253 = sbr.rel (%p251) target = $region44
        $region43: #{tpu_custom_call.1} parent=39 // pred_region
          %255 = dma.done %s247, 512
        $region44: #{tpu_custom_call.1} parent=39 // pred_fallthru
          _
        // Predicated region
        $region45: #{tpu_custom_call.1} parent=39 // pred_check
          %p256 = pneg %p66
        $region46: #{tpu_custom_call.1} parent=39 // pred_check_branch
          %258 = sbr.rel (%p256) target = $region48
        $region47: #{tpu_custom_call.1} parent=39 // pred_region
          %260 = dma.done [#allocation6], 4096
        $region48: #{tpu_custom_call.1} parent=39 // pred_fallthru
          _
        // Predicated region
        $region49: #{tpu_custom_call.1} parent=39 // pred_check
          %p261 = pneg %p87
        $region50: #{tpu_custom_call.1} parent=39 // pred_check_branch
          %263 = sbr.rel (%p261) target = $region52
        $region51: #{tpu_custom_call.1} parent=39 // pred_region
          %265 = dma.done [#allocation6], 32
        $region52: #{tpu_custom_call.1} parent=39 // pred_fallthru
          _
        // Predicated region
        $region53: #{tpu_custom_call.1} parent=39 // pred_check
          %p266 = pneg %p108
        $region54: #{tpu_custom_call.1} parent=39 // pred_check_branch
          %268 = sbr.rel (%p266) target = $region56
        $region55: #{tpu_custom_call.1} parent=39 // pred_region
          %270 = dma.done [#allocation9], 4096
        $region56: #{tpu_custom_call.1} parent=39 // pred_fallthru
          _
        %s271 = sand.u32 %s32, 1
        %s272 = scalar_lea.sflag [#allocation3], %s271
        %s273 = sand.u32 %s32, 1
        %s274 = smul.addr %s273, 32
        %s275 = scalar_lea.vmem [#allocation2], %s274
        %p276 = pneg %p45
        %p277 = pneg %p42
        %p278 = pneg %p66
        %p279 = pneg %p63
        %p280 = pneg %p87
        %p281 = pneg %p84
        %p282 = pneg %p108
        %p283 = pneg %p105
        %p284 = pneg %p129
        %p285 = pneg %p126
        %p286 = pneg %p155
        %p287 = pneg %p152
        %s288 = sand.u32 %s142, 1
        %s289 = scalar_lea.sflag [#allocation4], %s288
        %s290 = sand.u32 %s142, 1
        %s291 = smul.addr %s290, 32
        %s292 = scalar_lea.vmem [#allocation10], %s291
        %s293 = smul.u32 4, %s24
        %s294 = smul.u32 4, %s24
        %v295 = vld [vmem:[%s250] sm:$0xff]
        %v296 = vld [vmem:[%s250 + $0x8] sm:$0xff]
        %v297 = vld [vmem:[%s250 + $0x10] sm:$0xff]
        %v298 = vld [vmem:[%s250 + $0x18] sm:$0xff]
        %v299 = vld [vmem:[#allocation5] sm:$0xff]
        %v300 = vld [vmem:[#allocation5 + $0x8] sm:$0xff]
        %v301 = vld [vmem:[#allocation5 + $0x10] sm:$0xff]
        %v302 = vld [vmem:[#allocation5 + $0x18] sm:$0xff]
        %v303 = vld [vmem:[#allocation5 + $0x20] sm:$0xff]
        %v304 = vld [vmem:[#allocation5 + $0x28] sm:$0xff]
        %v305 = vld [vmem:[#allocation5 + $0x30] sm:$0xff]
        %v306 = vld [vmem:[#allocation5 + $0x38] sm:$0xff]
        %v307 = vld [vmem:[#allocation5 + $0x40] sm:$0xff]
        %v308 = vld [vmem:[#allocation5 + $0x48] sm:$0xff]
        %v309 = vld [vmem:[#allocation5 + $0x50] sm:$0xff]
        %v310 = vld [vmem:[#allocation5 + $0x58] sm:$0xff]
        %v311 = vld [vmem:[#allocation5 + $0x60] sm:$0xff]
        %v312 = vld [vmem:[#allocation5 + $0x68] sm:$0xff]
        %v313 = vld [vmem:[#allocation5 + $0x70] sm:$0xff]
        %v314 = vld [vmem:[#allocation5 + $0x78] sm:$0xff]
        %v315 = vld [vmem:[#allocation5 + $0x80] sm:$0xff]
        %v316 = vld [vmem:[#allocation5 + $0x88] sm:$0xff]
        %v317 = vld [vmem:[#allocation5 + $0x90] sm:$0xff]
        %v318 = vld [vmem:[#allocation5 + $0x98] sm:$0xff]
        %v319 = vld [vmem:[#allocation5 + $0xa0] sm:$0xff]
        %v320 = vld [vmem:[#allocation5 + $0xa8] sm:$0xff]
        %v321 = vld [vmem:[#allocation5 + $0xb0] sm:$0xff]
        %v322 = vld [vmem:[#allocation5 + $0xb8] sm:$0xff]
        %v323 = vld [vmem:[#allocation5 + $0xc0] sm:$0xff]
        %v324 = vld [vmem:[#allocation5 + $0xc8] sm:$0xff]
        %v325 = vld [vmem:[#allocation5 + $0xd0] sm:$0xff]
        %v326 = vld [vmem:[#allocation5 + $0xd8] sm:$0xff]
        %v327 = vld [vmem:[#allocation5 + $0xe0] sm:$0xff]
        %v328 = vld [vmem:[#allocation5 + $0xe8] sm:$0xff]
        %v329 = vld [vmem:[#allocation5 + $0xf0] sm:$0xff]
        %v330 = vld [vmem:[#allocation5 + $0xf8] sm:$0xff]
        %v331 = vld [vmem:[#allocation7] sm:$0x3]
        %v333 = vperm.slane %v331, 0
        %v334 = vperm.slane %v331, 1
        %337 = vmatpush.msra.mxu0 %v329
        %338 = vmatpush.msra.mxu0 %v327
        %339 = vmatpush.msra.mxu0 %v325
        %340 = vmatpush.msra.mxu0 %v323
        %341 = vmatpush.msra.mxu0 %v321
        %342 = vmatpush.msra.mxu0 %v319
        %343 = vmatpush.msra.mxu0 %v317
        %344 = vmatpush.msra.mxu0 %v315
        %345 = vmatpush.msra.mxu0 %v313
        %346 = vmatpush.msra.mxu0 %v311
        %347 = vmatpush.msra.mxu0 %v309
        %348 = vmatpush.msra.mxu0 %v307
        %349 = vmatpush.msra.mxu0 %v305
        %350 = vmatpush.msra.mxu0 %v303
        %351 = vmatpush.msra.mxu0 %v301
        %352 = vmatpush.msra.mxu0 %v299
        %353 = vmatmul.f32.gmra.mxu0 %v295
        %v354 = vpop.f32.mrf.mxu0
        %v355 = vadd.f32 %v333, %v354
        %356 = vmatmul.f32.gmra.mxu0 %v296
        %v357 = vpop.f32.mrf.mxu0
        %v358 = vadd.f32 %v333, %v357
        %359 = vmatmul.f32.gmra.mxu0 %v297
        %v360 = vpop.f32.mrf.mxu0
        %v361 = vadd.f32 %v333, %v360
        %362 = vmatmul.f32.gmra.mxu0 %v298
        %v363 = vpop.f32.mrf.mxu0
        %v364 = vadd.f32 %v333, %v363
        %365 = vdwg.mxu0
        %366 = vmatpush.msra.mxu0 %v330
        %367 = vmatpush.msra.mxu0 %v328
        %368 = vmatpush.msra.mxu0 %v326
        %369 = vmatpush.msra.mxu0 %v324
        %370 = vmatpush.msra.mxu0 %v322
        %371 = vmatpush.msra.mxu0 %v320
        %372 = vmatpush.msra.mxu0 %v318
        %373 = vmatpush.msra.mxu0 %v316
        %374 = vmatpush.msra.mxu0 %v314
        %375 = vmatpush.msra.mxu0 %v312
        %376 = vmatpush.msra.mxu0 %v310
        %377 = vmatpush.msra.mxu0 %v308
        %378 = vmatpush.msra.mxu0 %v306
        %379 = vmatpush.msra.mxu0 %v304
        %380 = vmatpush.msra.mxu0 %v302
        %381 = vmatpush.msra.mxu0 %v300
        %382 = vmatmul.f32.gmra.mxu0 %v295
        %v383 = vpop.f32.mrf.mxu0
        %v384 = vadd.f32 %v334, %v383
        %385 = vmatmul.f32.gmra.mxu0 %v296
        %v386 = vpop.f32.mrf.mxu0
        %v387 = vadd.f32 %v334, %v386
        %388 = vmatmul.f32.gmra.mxu0 %v297
        %v389 = vpop.f32.mrf.mxu0
        %v390 = vadd.f32 %v334, %v389
        %391 = vmatmul.f32.gmra.mxu0 %v298
        %v392 = vpop.f32.mrf.mxu0
        %v393 = vadd.f32 %v334, %v392
        %394 = vdwg.mxu0
        %v395 = vmax.f32 %v355, 0.0
        %v396 = vmax.f32 %v384, 0.0
        %v397 = vmax.f32 %v358, 0.0
        %v398 = vmax.f32 %v387, 0.0
        %v399 = vmax.f32 %v361, 0.0
        %v400 = vmax.f32 %v390, 0.0
        %v401 = vmax.f32 %v364, 0.0
        %v402 = vmax.f32 %v393, 0.0
        %v403 = vld [vmem:[#allocation8] sm:$0xff]
        %v404 = vld [vmem:[#allocation8 + $0x8] sm:$0xff]
        %v405 = vld [vmem:[#allocation8 + $0x10] sm:$0xff]
        %v406 = vld [vmem:[#allocation8 + $0x18] sm:$0xff]
        %v407 = vld [vmem:[#allocation8 + $0x20] sm:$0xff]
        %v408 = vld [vmem:[#allocation8 + $0x28] sm:$0xff]
        %v409 = vld [vmem:[#allocation8 + $0x30] sm:$0xff]
        %v410 = vld [vmem:[#allocation8 + $0x38] sm:$0xff]
        %v411 = vld [vmem:[#allocation8 + $0x40] sm:$0xff]
        %v412 = vld [vmem:[#allocation8 + $0x48] sm:$0xff]
        %v413 = vld [vmem:[#allocation8 + $0x50] sm:$0xff]
        %v414 = vld [vmem:[#allocation8 + $0x58] sm:$0xff]
        %v415 = vld [vmem:[#allocation8 + $0x60] sm:$0xff]
        %v416 = vld [vmem:[#allocation8 + $0x68] sm:$0xff]
        %v417 = vld [vmem:[#allocation8 + $0x70] sm:$0xff]
        %v418 = vld [vmem:[#allocation8 + $0x78] sm:$0xff]
        %v419 = vld [vmem:[#allocation8 + $0x80] sm:$0xff]
        %v420 = vld [vmem:[#allocation8 + $0x88] sm:$0xff]
        %v421 = vld [vmem:[#allocation8 + $0x90] sm:$0xff]
        %v422 = vld [vmem:[#allocation8 + $0x98] sm:$0xff]
        %v423 = vld [vmem:[#allocation8 + $0xa0] sm:$0xff]
        %v424 = vld [vmem:[#allocation8 + $0xa8] sm:$0xff]
        %v425 = vld [vmem:[#allocation8 + $0xb0] sm:$0xff]
        %v426 = vld [vmem:[#allocation8 + $0xb8] sm:$0xff]
        %v427 = vld [vmem:[#allocation8 + $0xc0] sm:$0xff]
        %v428 = vld [vmem:[#allocation8 + $0xc8] sm:$0xff]
        %v429 = vld [vmem:[#allocation8 + $0xd0] sm:$0xff]
        %v430 = vld [vmem:[#allocation8 + $0xd8] sm:$0xff]
        %v431 = vld [vmem:[#allocation8 + $0xe0] sm:$0xff]
        %v432 = vld [vmem:[#allocation8 + $0xe8] sm:$0xff]
        %v433 = vld [vmem:[#allocation8 + $0xf0] sm:$0xff]
        %v434 = vld [vmem:[#allocation8 + $0xf8] sm:$0xff]
        %v435 = vld [vmem:[%s4] sm:$0x1]
        %v437 = vperm.slane %v435, 0
        %439 = vmatpush.msra.mxu0 %v418
        %440 = vmatpush.msra.mxu0 %v417
        %441 = vmatpush.msra.mxu0 %v416
        %442 = vmatpush.msra.mxu0 %v415
        %443 = vmatpush.msra.mxu0 %v414
        %444 = vmatpush.msra.mxu0 %v413
        %445 = vmatpush.msra.mxu0 %v412
        %446 = vmatpush.msra.mxu0 %v411
        %447 = vmatpush.msra.mxu0 %v410
        %448 = vmatpush.msra.mxu0 %v409
        %449 = vmatpush.msra.mxu0 %v408
        %450 = vmatpush.msra.mxu0 %v407
        %451 = vmatpush.msra.mxu0 %v406
        %452 = vmatpush.msra.mxu0 %v405
        %453 = vmatpush.msra.mxu0 %v404
        %454 = vmatpush.msra.mxu0 %v403
        %455 = vmatmul.f32.gmra.mxu0 %v395
        %v456 = vpop.f32.mrf.mxu0
        %v457 = vadd.f32 %v437, %v456
        %458 = vmatmul.f32.gmra.mxu0 %v397
        %v459 = vpop.f32.mrf.mxu0
        %v460 = vadd.f32 %v437, %v459
        %461 = vmatmul.f32.gmra.mxu0 %v399
        %v462 = vpop.f32.mrf.mxu0
        %v463 = vadd.f32 %v437, %v462
        %464 = vmatmul.f32.gmra.mxu0 %v401
        %v465 = vpop.f32.mrf.mxu0
        %v466 = vadd.f32 %v437, %v465
        %467 = vdwg.mxu0
        %468 = vmatpush.msra.mxu0 %v434
        %469 = vmatpush.msra.mxu0 %v433
        %470 = vmatpush.msra.mxu0 %v432
        %471 = vmatpush.msra.mxu0 %v431
        %472 = vmatpush.msra.mxu0 %v430
        %473 = vmatpush.msra.mxu0 %v429
        %474 = vmatpush.msra.mxu0 %v428
        %475 = vmatpush.msra.mxu0 %v427
        %476 = vmatpush.msra.mxu0 %v426
        %477 = vmatpush.msra.mxu0 %v425
        %478 = vmatpush.msra.mxu0 %v424
        %479 = vmatpush.msra.mxu0 %v423
        %480 = vmatpush.msra.mxu0 %v422
        %481 = vmatpush.msra.mxu0 %v421
        %482 = vmatpush.msra.mxu0 %v420
        %483 = vmatpush.msra.mxu0 %v419
        %484 = vmatmul.f32.gmra.mxu0 %v396
        %v485 = vpop.f32.mrf.mxu0
        %v486 = vadd.f32 %v457, %v485
        %487 = vmatmul.f32.gmra.mxu0 %v398
        %v488 = vpop.f32.mrf.mxu0
        %v489 = vadd.f32 %v460, %v488
        %490 = vmatmul.f32.gmra.mxu0 %v400
        %v491 = vpop.f32.mrf.mxu0
        %v492 = vadd.f32 %v463, %v491
        %493 = vmatmul.f32.gmra.mxu0 %v402
        %v494 = vpop.f32.mrf.mxu0
        %v495 = vadd.f32 %v466, %v494
        %496 = vdwg.mxu0
        %497 = vst [vmem:[%s292] sm:$0xff] %v486
        %498 = vst [vmem:[%s292 + $0x8] sm:$0xff] %v489
        %499 = vst [vmem:[%s292 + $0x10] sm:$0xff] %v492
        %500 = vst [vmem:[%s292 + $0x18] sm:$0xff] %v495
        %s501 = sand.u32 %s142, 1
        %s502 = scalar_lea.sflag [#allocation4], %s501
        %s503 = sand.u32 %s142, 1
        %s504 = smul.addr %s503, 32
        %s505 = scalar_lea.vmem [#allocation10], %s504
        // Predicated region
        $region57: #{tpu_custom_call.1} parent=39 // pred_check
          %p506 = pneg %p152
        $region58: #{tpu_custom_call.1} parent=39 // pred_check_branch
          %508 = sbr.rel (%p506) target = $region60
        $region59: #{tpu_custom_call.1} parent=39 // pred_region
          %s509 = smul.u32 4, %s24
          %511 = vsyncadd %s502, 0
          %s512 = smul.addr %s509, 8
          %s513 = scalar_lea.hbm %s5, %s512
          %s514 = sshll.u32 %s505, 4
          %s515 = int_to_ptr.vmem [resolvable:$true] %s514
          %s516 = sshll.u32 %s513, 4
          %s517 = int_to_ptr.hbm [resolvable:$true] %s516
          %522 = dma.vmem_to_hbm [thread:$0]  %s515, 512, %s517, %s502, 128, 128, 8
        $region60: #{tpu_custom_call.1} parent=39 // pred_fallthru
          _
      $region40: #{tpu_custom_call.1} parent=5 // pred_fallthru
        _
      %p523 = scmp.le.s32.totalorder 2, %s19
      // Predicated region
      $region61: #{tpu_custom_call.1} parent=5 // pred_check
        %p524 = pneg %p523
      $region62: #{tpu_custom_call.1} parent=5 // pred_check_branch
        %526 = sbr.rel (%p524) target = $region64
      $region63: #{tpu_custom_call.1} parent=5 // pred_region
        %s527 = ssub.s32 %s19, 2
        // Predicated region
        $region65: #{tpu_custom_call.1} parent=63 // pred_check
          %p528 = pneg %p158
        $region66: #{tpu_custom_call.1} parent=63 // pred_check_branch
          %530 = sbr.rel (%p528) target = $region68
        $region67: #{tpu_custom_call.1} parent=63 // pred_region
          %s531 = sand.u32 %s143, 1
          %s532 = scalar_lea.sflag [#allocation4], %s531
          %s533 = sand.u32 %s143, 1
          %s534 = smul.addr %s533, 32
          %s535 = scalar_lea.vmem [#allocation10], %s534
          %537 = dma.done %s532, 512
        $region68: #{tpu_custom_call.1} parent=63 // pred_fallthru
          _
      $region64: #{tpu_custom_call.1} parent=5 // pred_fallthru
        _
    $region6: #{tpu_custom_call.1} parent=1 // loop_footer
      %s23 = sadd.s32 1, %s19
    $region7: #{tpu_custom_call.1} parent=1 // loop_footer_branch
      %18 = sbr.rel target = $region3
    $region8: #{tpu_custom_call.1} parent=1 // loop_exit
      _
    %538 = vsyncpa [#allocation3], 1
    %s539 = scalar_lea.sflag [#allocation3], 1
    %540 = vsyncpa %s539, 1
    %541 = vsyncpa [#allocation6], 1
    %542 = vsyncpa [#allocation9], 1
    %543 = vsyncpa [#allocation4], 1
    %s544 = scalar_lea.sflag [#allocation4], 1
    %545 = vsyncpa %s544, 1

</llo_original>
